<compile_context>
chip_gen: v6e
topology: v6e:2x2x1
jax: 0.10.0
libtpu: 0.0.40
codegen_flags: <defaults>
</compile_context>

<pallas_src>
import functools

import jax
import jax.numpy as jnp
from jax.experimental import pallas as pl
from jax.experimental.pallas import tpu as pltpu

INPUT_SIZE = len(['Open', 'High', 'Low', 'Volume', 'SMA50', 'SMA200', 'MACrossover',
                  'RSI', 'RSI_Signal', 'BB_Mid', 'BB_High', 'BB_Low', 'Hour',
                  'DayOfWeek', 'Month'])  # = 15
H1, H2, H3, OUT = 128, 64, 32, 1


def mlp_kernel(x_ref, w1_ref, b1_ref, w2_ref, b2_ref, w3_ref, b3_ref,
               w4_ref, b4_ref, o_ref):
    """One batch tile: x_ref is (15, bt) bf16, o_ref is (1, bt) f32.

    All matmuls run on the MXU in bf16 with f32 accumulation; bias adds and ReLU
    stay in f32, activations are re-quantized to bf16 between layers.
    """
    x = x_ref[...]                                                     # (15, bt) bf16
    h = jnp.dot(w1_ref[...], x, preferred_element_type=jnp.float32) + b1_ref[...]
    h = jnp.maximum(h, 0.0).astype(jnp.bfloat16)                       # (128, bt)
    h = jnp.dot(w2_ref[...], h, preferred_element_type=jnp.float32) + b2_ref[...]
    h = jnp.maximum(h, 0.0).astype(jnp.bfloat16)                       # (64, bt)
    h = jnp.dot(w3_ref[...], h, preferred_element_type=jnp.float32) + b3_ref[...]
    h = jnp.maximum(h, 0.0).astype(jnp.bfloat16)                       # (32, bt)
    y = jnp.dot(w4_ref[...], h, preferred_element_type=jnp.float32) + b4_ref[...]
    o_ref[...] = y.astype(o_ref.dtype)                                 # (1, bt)


def _choose_tile(batch, requested):
    """Pick a 128-multiple tile; keep >=2 grid steps when possible (v7x: 2 TCs)."""
    if batch >= 2 * requested:
        return requested
    half = -(-batch // 2)                 # cdiv(batch, 2)
    tile = -(-half // 128) * 128          # round up to multiple of 128
    return max(128, min(requested, tile))


def reference_forward_f32(x, params):
    """Exact PyTorch (f32) semantics."""
    w1, b1, w2, b2, w3, b3, w4, b4 = params
    h = jnp.maximum(x @ w1.T + b1, 0.0)
    h = jnp.maximum(h @ w2.T + b2, 0.0)
    h = jnp.maximum(h @ w3.T + b3, 0.0)
    return h @ w4.T + b4


_reference_forward_f32_jit = jax.jit(reference_forward_f32)


def reference_forward_bf16(x, params):
    """Dtype-faithful mirror of the Pallas kernel (bf16 MXU inputs, f32 accum)."""
    w1, b1, w2, b2, w3, b3, w4, b4 = params
    bf = jnp.bfloat16
    h = x.astype(bf).T                                                  # (15, B)
    h = jnp.dot(w1.astype(bf), h, preferred_element_type=jnp.float32) + b1[:, None]
    h = jnp.maximum(h, 0.0).astype(bf)
    h = jnp.dot(w2.astype(bf), h, preferred_element_type=jnp.float32) + b2[:, None]
    h = jnp.maximum(h, 0.0).astype(bf)
    h = jnp.dot(w3.astype(bf), h, preferred_element_type=jnp.float32) + b3[:, None]
    h = jnp.maximum(h, 0.0).astype(bf)
    y = jnp.dot(w4.astype(bf), h, preferred_element_type=jnp.float32) + b4[:, None]
    return y.T                                                          # (B, 1)


@functools.partial(jax.jit, static_argnames=("batch_tile", "force_pallas"))
def stock_price_predictor(x, params, *, batch_tile=512, force_pallas=False):
    """x: [B, 15] float32 -> [B, 1] float32. params: PyTorch-native (w[out,in], b[out])."""
    w1, b1, w2, b2, w3, b3, w4, b4 = params
    B, F = x.shape
    assert F == INPUT_SIZE

    # Tiny batches: pallas_call + DMA setup cost exceeds the ~200 KFLOP of work;
    # XLA's fused GEMM path is strictly faster here.
    if B <= 128 and not force_pallas:
        return reference_forward_f32(x, params)

    bt = _choose_tile(B, batch_tile)
    n_tiles = pl.cdiv(B, bt)
    b_pad = n_tiles * bt

    # Lane-dense transposed layout: (features, batch), batch on the 128-lane axis.
    # Under jit the cast + transpose + pad fuse into a single pre-processing fusion.
    x_t = x.astype(jnp.bfloat16).T                                      # (15, B)
    if b_pad != B:
        x_t = jnp.pad(x_t, ((0, 0), (0, b_pad - B)))                    # (15, b_pad)

    w1b, w2b, w3b, w4b = (w.astype(jnp.bfloat16) for w in (w1, w2, w3, w4))
    b1c, b2c, b3c, b4c = (b.reshape(-1, 1).astype(jnp.float32)
                          for b in (b1, b2, b3, b4))                    # (out, 1)

    flops = 2 * b_pad * (INPUT_SIZE * H1 + H1 * H2 + H2 * H3 + H3 * OUT)
    bytes_accessed = (x_t.size * 2 + b_pad * OUT * 4
                      + 2 * sum(w.size for w in (w1b, w2b, w3b, w4b))
                      + 4 * sum(b.size for b in (b1c, b2c, b3c, b4c)))

    def resident(arr):
        # Whole array, same block every grid step -> fetched once, stays in VMEM.
        return pl.BlockSpec(arr.shape, lambda i: (0, 0))

    out_t = pl.pallas_call(
        mlp_kernel,
        out_shape=jax.ShapeDtypeStruct((OUT, b_pad), jnp.float32),
        grid_spec=pltpu.PrefetchScalarGridSpec(
            num_scalar_prefetch=0,
            grid=(n_tiles,),
            in_specs=[
                pl.BlockSpec((INPUT_SIZE, bt), lambda i: (0, i)),       # x tile
                resident(w1b), resident(b1c),
                resident(w2b), resident(b2c),
                resident(w3b), resident(b3c),
                resident(w4b), resident(b4c),
            ],
            out_specs=pl.BlockSpec((OUT, bt), lambda i: (0, i)),        # lane-dense out
        ),
        compiler_params=pltpu.CompilerParams(
            dimension_semantics=("parallel",)),
        cost_estimate=pl.CostEstimate(
            flops=flops, transcendentals=0, bytes_accessed=bytes_accessed),
    )(x_t, w1b, b1c, w2b, b2c, w3b, b3c, w4b, b4c)

    # (1, b_pad) -> (b_pad, 1) is a free reshape; slice off the padding rows.
    return out_t.reshape(b_pad, OUT)[:B]


def init_params(key):
    """PyTorch nn.Linear defaults: uniform(-1/sqrt(fan_in), +1/sqrt(fan_in)).

    Weights are kept in PyTorch-native [out_features, in_features] layout."""
    dims = [(INPUT_SIZE, H1), (H1, H2), (H2, H3), (H3, OUT)]
    params = []
    for fan_in, fan_out in dims:
        key, kw, kb = jax.random.split(key, 3)
        bound = 1.0 / jnp.sqrt(fan_in)
        w = jax.random.uniform(kw, (fan_out, fan_in), jnp.float32, -bound, bound)
        b = jax.random.uniform(kb, (fan_out,), jnp.float32, -bound, bound)
        params += [w, b]
    return params


if __name__ == "__main__":
    key = jax.random.PRNGKey(0)
    key, kx = jax.random.split(key)

    # Small batch, non-multiple of the 128-row tile -> exercises padding + 2-step grid.
    B = 200
    x = jax.random.normal(kx, (B, INPUT_SIZE), jnp.float32)
    params = init_params(key)

    out = stock_price_predictor(x, params, force_pallas=True)
    out = jax.block_until_ready(out)
    assert out.shape == (B, OUT), out.shape

    # Tight check vs a dtype-faithful (bf16 MXU / f32 accumulate) reference.
    ref_bf16 = reference_forward_bf16(x, params)
    assert jnp.allclose(out, ref_bf16, atol=5e-3, rtol=5e-3), "mismatch vs bf16 reference"

    # Loose sanity check vs the exact f32 PyTorch semantics.
    ref_f32 = _reference_forward_f32_jit(x, params)
    assert jnp.allclose(out, ref_f32, atol=5e-2, rtol=5e-2), "mismatch vs f32 reference"

    # Tiny batch forced through the Pallas path (pads 8 -> 128 columns).
    tiny = jax.block_until_ready(stock_price_predictor(x[:8], params, force_pallas=True))
    assert tiny.shape == (8, OUT)
    assert jnp.allclose(tiny, ref_bf16[:8], atol=5e-3, rtol=5e-3)

    # Default dispatch for tiny batches: fused XLA path (exact f32 semantics).
    small = jax.block_until_ready(stock_price_predictor(x[:8], params))
    assert small.shape == (8, OUT)
    assert jnp.allclose(small, ref_f32[:8], atol=1e-5, rtol=1e-5)

    print("KERNEL_OK")
</pallas_src>

<mosaic_0001>
module attributes {stable_mosaic.version = 11 : i64} {
  func.func @mlp_kernel(%arg0: i32, %arg1: memref<15x128xbf16, #tpu.memory_space<vmem>>, %arg2: memref<128x15xbf16, #tpu.memory_space<vmem>>, %arg3: memref<128x1xf32, #tpu.memory_space<vmem>>, %arg4: memref<64x128xbf16, #tpu.memory_space<vmem>>, %arg5: memref<64x1xf32, #tpu.memory_space<vmem>>, %arg6: memref<32x64xbf16, #tpu.memory_space<vmem>>, %arg7: memref<32x1xf32, #tpu.memory_space<vmem>>, %arg8: memref<1x32xbf16, #tpu.memory_space<vmem>>, %arg9: memref<1x1xf32, #tpu.memory_space<vmem>>, %arg10: memref<1x128xf32, #tpu.memory_space<vmem>>) attributes {dimension_semantics = [#tpu.dimension_semantics<parallel>], iteration_bounds = array<i64: 2>, scalar_prefetch = 0 : i64, scratch_operands = 0 : i64, tpu.core_type = #tpu.core_type<tc>, window_params = [{transform_indices = @transform_0, window_bounds = array<i64: 15, 128>}, {pipeline_mode = #tpu.pipeline_mode<synchronous>, transform_indices = @transform_1, window_bounds = array<i64: 128, 15>}, {pipeline_mode = #tpu.pipeline_mode<synchronous>, transform_indices = @transform_2, window_bounds = array<i64: 128, 1>}, {pipeline_mode = #tpu.pipeline_mode<synchronous>, transform_indices = @transform_3, window_bounds = array<i64: 64, 128>}, {pipeline_mode = #tpu.pipeline_mode<synchronous>, transform_indices = @transform_4, window_bounds = array<i64: 64, 1>}, {pipeline_mode = #tpu.pipeline_mode<synchronous>, transform_indices = @transform_5, window_bounds = array<i64: 32, 64>}, {pipeline_mode = #tpu.pipeline_mode<synchronous>, transform_indices = @transform_6, window_bounds = array<i64: 32, 1>}, {pipeline_mode = #tpu.pipeline_mode<synchronous>, transform_indices = @transform_7, window_bounds = array<i64: 1, 32>}, {pipeline_mode = #tpu.pipeline_mode<synchronous>, transform_indices = @transform_8, window_bounds = array<i64: 1, 1>}, {transform_indices = @transform_9, window_bounds = array<i64: 1, 128>}]} {
    %c0 = arith.constant 0 : index
    %c0_0 = arith.constant 0 : index
    %0 = vector.load %arg1[%c0, %c0_0] : memref<15x128xbf16, #tpu.memory_space<vmem>>, vector<15x128xbf16>
    %c0_1 = arith.constant 0 : index
    %c0_2 = arith.constant 0 : index
    %1 = vector.load %arg2[%c0_1, %c0_2] : memref<128x15xbf16, #tpu.memory_space<vmem>>, vector<128x15xbf16>
    %cst = arith.constant dense<0.000000e+00> : vector<128x128xf32>
    %2 = tpu.matmul %1, %0, %cst {dimension_numbers = #tpu.dot_dimension_numbers<[1], [0], [0], [1], [0, 0, 1, 1], [], []>} : vector<128x15xbf16>, vector<15x128xbf16>, vector<128x128xf32> -> vector<128x128xf32>
    %c0_3 = arith.constant 0 : index
    %c0_4 = arith.constant 0 : index
    %3 = vector.load %arg3[%c0_3, %c0_4] : memref<128x1xf32, #tpu.memory_space<vmem>>, vector<128x1xf32>
    %4 = vector.broadcast %3 : vector<128x1xf32> to vector<128x128xf32>
    %5 = arith.addf %2, %4 : vector<128x128xf32>
    %cst_5 = arith.constant 0.000000e+00 : f32
    %6 = vector.broadcast %cst_5 : f32 to vector<128x128xf32>
    %7 = arith.maximumf %5, %6 : vector<128x128xf32>
    %8 = arith.truncf %7 : vector<128x128xf32> to vector<128x128xbf16>
    %c0_6 = arith.constant 0 : index
    %c0_7 = arith.constant 0 : index
    %9 = vector.load %arg4[%c0_6, %c0_7] : memref<64x128xbf16, #tpu.memory_space<vmem>>, vector<64x128xbf16>
    %cst_8 = arith.constant dense<0.000000e+00> : vector<64x128xf32>
    %10 = tpu.matmul %9, %8, %cst_8 {dimension_numbers = #tpu.dot_dimension_numbers<[1], [0], [0], [1], [0, 0, 1, 1], [], []>} : vector<64x128xbf16>, vector<128x128xbf16>, vector<64x128xf32> -> vector<64x128xf32>
    %c0_9 = arith.constant 0 : index
    %c0_10 = arith.constant 0 : index
    %11 = vector.load %arg5[%c0_9, %c0_10] : memref<64x1xf32, #tpu.memory_space<vmem>>, vector<64x1xf32>
    %12 = vector.broadcast %11 : vector<64x1xf32> to vector<64x128xf32>
    %13 = arith.addf %10, %12 : vector<64x128xf32>
    %cst_11 = arith.constant 0.000000e+00 : f32
    %14 = vector.broadcast %cst_11 : f32 to vector<64x128xf32>
    %15 = arith.maximumf %13, %14 : vector<64x128xf32>
    %16 = arith.truncf %15 : vector<64x128xf32> to vector<64x128xbf16>
    %c0_12 = arith.constant 0 : index
    %c0_13 = arith.constant 0 : index
    %17 = vector.load %arg6[%c0_12, %c0_13] : memref<32x64xbf16, #tpu.memory_space<vmem>>, vector<32x64xbf16>
    %cst_14 = arith.constant dense<0.000000e+00> : vector<32x128xf32>
    %18 = tpu.matmul %17, %16, %cst_14 {dimension_numbers = #tpu.dot_dimension_numbers<[1], [0], [0], [1], [0, 0, 1, 1], [], []>} : vector<32x64xbf16>, vector<64x128xbf16>, vector<32x128xf32> -> vector<32x128xf32>
    %c0_15 = arith.constant 0 : index
    %c0_16 = arith.constant 0 : index
    %19 = vector.load %arg7[%c0_15, %c0_16] : memref<32x1xf32, #tpu.memory_space<vmem>>, vector<32x1xf32>
    %20 = vector.broadcast %19 : vector<32x1xf32> to vector<32x128xf32>
    %21 = arith.addf %18, %20 : vector<32x128xf32>
    %cst_17 = arith.constant 0.000000e+00 : f32
    %22 = vector.broadcast %cst_17 : f32 to vector<32x128xf32>
    %23 = arith.maximumf %21, %22 : vector<32x128xf32>
    %24 = arith.truncf %23 : vector<32x128xf32> to vector<32x128xbf16>
    %c0_18 = arith.constant 0 : index
    %c0_19 = arith.constant 0 : index
    %25 = vector.load %arg8[%c0_18, %c0_19] : memref<1x32xbf16, #tpu.memory_space<vmem>>, vector<1x32xbf16>
    %cst_20 = arith.constant dense<0.000000e+00> : vector<1x128xf32>
    %26 = tpu.matmul %25, %24, %cst_20 {dimension_numbers = #tpu.dot_dimension_numbers<[1], [0], [0], [1], [0, 0, 1, 1], [], []>} : vector<1x32xbf16>, vector<32x128xbf16>, vector<1x128xf32> -> vector<1x128xf32>
    %c0_21 = arith.constant 0 : index
    %c0_22 = arith.constant 0 : index
    %27 = vector.load %arg9[%c0_21, %c0_22] : memref<1x1xf32, #tpu.memory_space<vmem>>, vector<1x1xf32>
    %28 = vector.broadcast %27 : vector<1x1xf32> to vector<1x128xf32>
    %29 = arith.addf %26, %28 : vector<1x128xf32>
    %c0_23 = arith.constant 0 : index
    %c0_24 = arith.constant 0 : index
    %30 = vector.load %arg10[%c0_23, %c0_24] : memref<1x128xf32, #tpu.memory_space<vmem>>, vector<1x128xf32>
    tpu.vector_store %arg10[%c0_23, %c0_24], %29 {strides = array<i32>} : memref<1x128xf32, #tpu.memory_space<vmem>>, vector<1x128xf32>,
    return
  }
  func.func @transform_0(%arg0: i32) -> (i32, i32) {
    %c0_i32 = arith.constant 0 : i32
    %c0_i32_0 = arith.constant 0 : i32
    return %c0_i32, %arg0 : i32, i32
  }
  func.func @transform_1(%arg0: i32) -> (i32, i32) {
    %c0_i32 = arith.constant 0 : i32
    %c0_i32_0 = arith.constant 0 : i32
    %c0_i32_1 = arith.constant 0 : i32
    return %c0_i32, %c0_i32_0 : i32, i32
  }
  func.func @transform_2(%arg0: i32) -> (i32, i32) {
    %c0_i32 = arith.constant 0 : i32
    %c0_i32_0 = arith.constant 0 : i32
    %c0_i32_1 = arith.constant 0 : i32
    return %c0_i32, %c0_i32_0 : i32, i32
  }
  func.func @transform_3(%arg0: i32) -> (i32, i32) {
    %c0_i32 = arith.constant 0 : i32
    %c0_i32_0 = arith.constant 0 : i32
    %c0_i32_1 = arith.constant 0 : i32
    return %c0_i32, %c0_i32_0 : i32, i32
  }
  func.func @transform_4(%arg0: i32) -> (i32, i32) {
    %c0_i32 = arith.constant 0 : i32
    %c0_i32_0 = arith.constant 0 : i32
    %c0_i32_1 = arith.constant 0 : i32
    return %c0_i32, %c0_i32_0 : i32, i32
  }
  func.func @transform_5(%arg0: i32) -> (i32, i32) {
    %c0_i32 = arith.constant 0 : i32
    %c0_i32_0 = arith.constant 0 : i32
    %c0_i32_1 = arith.constant 0 : i32
    return %c0_i32, %c0_i32_0 : i32, i32
  }
  func.func @transform_6(%arg0: i32) -> (i32, i32) {
    %c0_i32 = arith.constant 0 : i32
    %c0_i32_0 = arith.constant 0 : i32
    %c0_i32_1 = arith.constant 0 : i32
    return %c0_i32, %c0_i32_0 : i32, i32
  }
  func.func @transform_7(%arg0: i32) -> (i32, i32) {
    %c0_i32 = arith.constant 0 : i32
    %c0_i32_0 = arith.constant 0 : i32
    %c0_i32_1 = arith.constant 0 : i32
    return %c0_i32, %c0_i32_0 : i32, i32
  }
  func.func @transform_8(%arg0: i32) -> (i32, i32) {
    %c0_i32 = arith.constant 0 : i32
    %c0_i32_0 = arith.constant 0 : i32
    %c0_i32_1 = arith.constant 0 : i32
    return %c0_i32, %c0_i32_0 : i32, i32
  }
  func.func @transform_9(%arg0: i32) -> (i32, i32) {
    %c0_i32 = arith.constant 0 : i32
    %c0_i32_0 = arith.constant 0 : i32
    return %c0_i32, %arg0 : i32, i32
  }
}

</mosaic_0001>

<llo_original>
// kernel: stock_price_predictor.1
$region0: #{stock_price_predictor.1}
  #allocation0 [shape = 'u32[]', space=smem, size = 0x4, offset = 0x4, fixed_abs, tag = 'smem constant byte address 0x4 - core index']
  #allocation1 [shape = 'u32[144,128]{1,0:T(1,128)}', space=vmem, size = 0x12000, scoped, tag = 'internal scratch']
  #allocation2 [shape = 'f32[1,1]{1,0:T(1,128)S(1)}', space=vmem, size = 0x200, scoped, tag = 'scoped memory for stock_price_predictor.1']
  %s0 = inlined_call_operand.vmem [shape: bf16[15,256], index: 0, kind: input, shape index: {}]
  %s1 = inlined_call_operand.vmem [shape: bf16[128,15], index: 1, kind: input, shape index: {}]
  %s2 = inlined_call_operand.vmem [shape: f32[128,1], index: 2, kind: input, shape index: {}]
  %s3 = inlined_call_operand.vmem [shape: bf16[64,128], index: 3, kind: input, shape index: {}]
  %s4 = inlined_call_operand.vmem [shape: f32[64,1], index: 4, kind: input, shape index: {}]
  %s5 = inlined_call_operand.vmem [shape: bf16[32,64], index: 5, kind: input, shape index: {}]
  %s6 = inlined_call_operand.vmem [shape: f32[32,1], index: 6, kind: input, shape index: {}]
  %s7 = inlined_call_operand.vmem [shape: bf16[1,32], index: 7, kind: input, shape index: {}]
  %s8 = inlined_call_operand.<no memory space> [shape: f32[1,1], index: 8, kind: input, shape index: {}]
  %s9 = inlined_call_operand.vmem [shape: f32[1,256], index: 9, kind: output, shape index: {}]
  %s10 = sld [smem:[#allocation0]]
  $region110: #{stock_price_predictor.1} parent=0
    _
  %s12 = ssub.s32 1, %s10
  %s13 = scalar_select 0, %s12, %s10
  %v14 = vstv %s8
  %15 = vst [vmem:[#allocation2] sm:$0x1] %v14
  $region1: #{stock_price_predictor.1} parent=0
    #allocation3 [shape = 'u8[8192]{0}', space=vmem, size = 0x2000, scoped, tag = 'input window, operand 0']
    loop: start=0, step=1, limit=4
    $region2: #{stock_price_predictor.1} parent=1 // loop_pre_header
      _
    $region3: #{stock_price_predictor.1} parent=1 // loop_header
      %s17 = sphi 0, %s21
      %p18 = scmp.ge.s32.totalorder %s17, 4
      %s27 = sphi 0, %s29
      %s30 = sphi 0, %s27
      %s31 = sphi 0, %s30
      %s47 = sphi 0, %s31
      %s51 = sphi 0, %s51
      %s53 = sphi 0, %s51
      %s54 = sphi 0, %s53
      %s68 = sphi 0, %s54
      %s72 = sphi 0, %s72
      %s74 = sphi 0, %s72
      %s75 = sphi 0, %s74
      %s89 = sphi 0, %s75
      %s93 = sphi 0, %s93
      %s95 = sphi 0, %s93
      %s96 = sphi 0, %s95
      %s110 = sphi 0, %s96
      %s114 = sphi 0, %s114
      %s116 = sphi 0, %s114
      %s117 = sphi 0, %s116
      %s131 = sphi 0, %s117
      %s135 = sphi 0, %s135
      %s137 = sphi 0, %s135
      %s138 = sphi 0, %s137
      %s152 = sphi 0, %s138
      %s156 = sphi 0, %s156
      %s158 = sphi 0, %s156
      %s159 = sphi 0, %s158
      %s173 = sphi 0, %s159
      %s177 = sphi 0, %s177
      %s179 = sphi 0, %s177
      %s180 = sphi 0, %s179
      %s194 = sphi 0, %s180
      %s198 = sphi 0, %s198
      %s200 = sphi 0, %s198
      %s201 = sphi 0, %s200
      %s215 = sphi 0, %s201
      %s221 = sphi 0, %s223
      %s224 = sphi 0, %s221
      %s225 = sphi 0, %s224
      %s241 = sphi 0, %s225
    $region4: #{stock_price_predictor.1} parent=1 // loop_header_branch
      %20 = sbr.rel (%p18) target = $region8
    $region5: #{stock_price_predictor.1} parent=1 // loop_body
      %s22 = ssub.s32 %s17, 1
      %s23 = ssub.s32 %s17, 2
      %s24 = sadd.s32 %s17, 1
      %s25 = ssub.s32 %s17, %s24
      %p26 = scmp.eq.s32.totalorder %s25, 0
      %s28 = sadd.s32 %s27, 1
      %s29 = scalar_select %p26, %s27, %s28
      %p32 = pneg %p26
      %p33 = scmp.eq.s32.totalorder %s17, 1
      %p34 = por %p32, %p33
      %p35 = scmp.ne.s32.totalorder %s27, %s30
      %p36 = scmp.eq.s32.totalorder %s17, 0
      %p37 = por %p35, %p36
      %p38 = scmp.ne.s32.totalorder %s27, %s30
      %p39 = scmp.eq.s32.totalorder %s22, 1
      %p40 = por %p38, %p39
      %p41 = scmp.ne.s32.totalorder %s30, %s31
      %p42 = scmp.eq.s32.totalorder %s22, 0
      %p43 = por %p41, %p42
      %p44 = scmp.ne.s32.totalorder %s30, %s31
      %p45 = scmp.eq.s32.totalorder %s23, 1
      %p46 = por %p44, %p45
      %p48 = scmp.ne.s32.totalorder %s31, %s47
      %p49 = scmp.eq.s32.totalorder %s23, 0
      %p50 = por %p48, %p49
      %s52 = sadd.s32 %s51, 1
      %p55 = scmp.eq.s32.totalorder %s17, 1
      %p56 = scmp.ne.s32.totalorder %s51, %s53
      %p57 = scmp.eq.s32.totalorder %s17, 0
      %p58 = por %p56, %p57
      %p59 = scmp.ne.s32.totalorder %s51, %s53
      %p60 = scmp.eq.s32.totalorder %s22, 1
      %p61 = por %p59, %p60
      %p62 = scmp.ne.s32.totalorder %s53, %s54
      %p63 = scmp.eq.s32.totalorder %s22, 0
      %p64 = por %p62, %p63
      %p65 = scmp.ne.s32.totalorder %s53, %s54
      %p66 = scmp.eq.s32.totalorder %s23, 1
      %p67 = por %p65, %p66
      %p69 = scmp.ne.s32.totalorder %s54, %s68
      %p70 = scmp.eq.s32.totalorder %s23, 0
      %p71 = por %p69, %p70
      %s73 = sadd.s32 %s72, 1
      %p76 = scmp.eq.s32.totalorder %s17, 1
      %p77 = scmp.ne.s32.totalorder %s72, %s74
      %p78 = scmp.eq.s32.totalorder %s17, 0
      %p79 = por %p77, %p78
      %p80 = scmp.ne.s32.totalorder %s72, %s74
      %p81 = scmp.eq.s32.totalorder %s22, 1
      %p82 = por %p80, %p81
      %p83 = scmp.ne.s32.totalorder %s74, %s75
      %p84 = scmp.eq.s32.totalorder %s22, 0
      %p85 = por %p83, %p84
      %p86 = scmp.ne.s32.totalorder %s74, %s75
      %p87 = scmp.eq.s32.totalorder %s23, 1
      %p88 = por %p86, %p87
      %p90 = scmp.ne.s32.totalorder %s75, %s89
      %p91 = scmp.eq.s32.totalorder %s23, 0
      %p92 = por %p90, %p91
      %s94 = sadd.s32 %s93, 1
      %p97 = scmp.eq.s32.totalorder %s17, 1
      %p98 = scmp.ne.s32.totalorder %s93, %s95
      %p99 = scmp.eq.s32.totalorder %s17, 0
      %p100 = por %p98, %p99
      %p101 = scmp.ne.s32.totalorder %s93, %s95
      %p102 = scmp.eq.s32.totalorder %s22, 1
      %p103 = por %p101, %p102
      %p104 = scmp.ne.s32.totalorder %s95, %s96
      %p105 = scmp.eq.s32.totalorder %s22, 0
      %p106 = por %p104, %p105
      %p107 = scmp.ne.s32.totalorder %s95, %s96
      %p108 = scmp.eq.s32.totalorder %s23, 1
      %p109 = por %p107, %p108
      %p111 = scmp.ne.s32.totalorder %s96, %s110
      %p112 = scmp.eq.s32.totalorder %s23, 0
      %p113 = por %p111, %p112
      %s115 = sadd.s32 %s114, 1
      %p118 = scmp.eq.s32.totalorder %s17, 1
      %p119 = scmp.ne.s32.totalorder %s114, %s116
      %p120 = scmp.eq.s32.totalorder %s17, 0
      %p121 = por %p119, %p120
      %p122 = scmp.ne.s32.totalorder %s114, %s116
      %p123 = scmp.eq.s32.totalorder %s22, 1
      %p124 = por %p122, %p123
      %p125 = scmp.ne.s32.totalorder %s116, %s117
      %p126 = scmp.eq.s32.totalorder %s22, 0
      %p127 = por %p125, %p126
      %p128 = scmp.ne.s32.totalorder %s116, %s117
      %p129 = scmp.eq.s32.totalorder %s23, 1
      %p130 = por %p128, %p129
      %p132 = scmp.ne.s32.totalorder %s117, %s131
      %p133 = scmp.eq.s32.totalorder %s23, 0
      %p134 = por %p132, %p133
      %s136 = sadd.s32 %s135, 1
      %p139 = scmp.eq.s32.totalorder %s17, 1
      %p140 = scmp.ne.s32.totalorder %s135, %s137
      %p141 = scmp.eq.s32.totalorder %s17, 0
      %p142 = por %p140, %p141
      %p143 = scmp.ne.s32.totalorder %s135, %s137
      %p144 = scmp.eq.s32.totalorder %s22, 1
      %p145 = por %p143, %p144
      %p146 = scmp.ne.s32.totalorder %s137, %s138
      %p147 = scmp.eq.s32.totalorder %s22, 0
      %p148 = por %p146, %p147
      %p149 = scmp.ne.s32.totalorder %s137, %s138
      %p150 = scmp.eq.s32.totalorder %s23, 1
      %p151 = por %p149, %p150
      %p153 = scmp.ne.s32.totalorder %s138, %s152
      %p154 = scmp.eq.s32.totalorder %s23, 0
      %p155 = por %p153, %p154
      %s157 = sadd.s32 %s156, 1
      %p160 = scmp.eq.s32.totalorder %s17, 1
      %p161 = scmp.ne.s32.totalorder %s156, %s158
      %p162 = scmp.eq.s32.totalorder %s17, 0
      %p163 = por %p161, %p162
      %p164 = scmp.ne.s32.totalorder %s156, %s158
      %p165 = scmp.eq.s32.totalorder %s22, 1
      %p166 = por %p164, %p165
      %p167 = scmp.ne.s32.totalorder %s158, %s159
      %p168 = scmp.eq.s32.totalorder %s22, 0
      %p169 = por %p167, %p168
      %p170 = scmp.ne.s32.totalorder %s158, %s159
      %p171 = scmp.eq.s32.totalorder %s23, 1
      %p172 = por %p170, %p171
      %p174 = scmp.ne.s32.totalorder %s159, %s173
      %p175 = scmp.eq.s32.totalorder %s23, 0
      %p176 = por %p174, %p175
      %s178 = sadd.s32 %s177, 1
      %p181 = scmp.eq.s32.totalorder %s17, 1
      %p182 = scmp.ne.s32.totalorder %s177, %s179
      %p183 = scmp.eq.s32.totalorder %s17, 0
      %p184 = por %p182, %p183
      %p185 = scmp.ne.s32.totalorder %s177, %s179
      %p186 = scmp.eq.s32.totalorder %s22, 1
      %p187 = por %p185, %p186
      %p188 = scmp.ne.s32.totalorder %s179, %s180
      %p189 = scmp.eq.s32.totalorder %s22, 0
      %p190 = por %p188, %p189
      %p191 = scmp.ne.s32.totalorder %s179, %s180
      %p192 = scmp.eq.s32.totalorder %s23, 1
      %p193 = por %p191, %p192
      %p195 = scmp.ne.s32.totalorder %s180, %s194
      %p196 = scmp.eq.s32.totalorder %s23, 0
      %p197 = por %p195, %p196
      %s199 = sadd.s32 %s198, 1
      %p202 = scmp.eq.s32.totalorder %s17, 1
      %p203 = scmp.ne.s32.totalorder %s198, %s200
      %p204 = scmp.eq.s32.totalorder %s17, 0
      %p205 = por %p203, %p204
      %p206 = scmp.ne.s32.totalorder %s198, %s200
      %p207 = scmp.eq.s32.totalorder %s22, 1
      %p208 = por %p206, %p207
      %p209 = scmp.ne.s32.totalorder %s200, %s201
      %p210 = scmp.eq.s32.totalorder %s22, 0
      %p211 = por %p209, %p210
      %p212 = scmp.ne.s32.totalorder %s200, %s201
      %p213 = scmp.eq.s32.totalorder %s23, 1
      %p214 = por %p212, %p213
      %p216 = scmp.ne.s32.totalorder %s201, %s215
      %p217 = scmp.eq.s32.totalorder %s23, 0
      %p218 = por %p216, %p217
      %s219 = ssub.s32 %s17, %s24
      %p220 = scmp.eq.s32.totalorder %s219, 0
      %s222 = sadd.s32 %s221, 1
      %s223 = scalar_select %p220, %s221, %s222
      %p226 = pneg %p220
      %p227 = scmp.eq.s32.totalorder %s17, 1
      %p228 = por %p226, %p227
      %p229 = scmp.ne.s32.totalorder %s221, %s224
      %p230 = scmp.eq.s32.totalorder %s17, 0
      %p231 = por %p229, %p230
      %p232 = scmp.ne.s32.totalorder %s221, %s224
      %p233 = scmp.eq.s32.totalorder %s22, 1
      %p234 = por %p232, %p233
      %p235 = scmp.ne.s32.totalorder %s224, %s225
      %p236 = scmp.eq.s32.totalorder %s22, 0
      %p237 = por %p235, %p236
      %p238 = scmp.ne.s32.totalorder %s224, %s225
      %p239 = scmp.eq.s32.totalorder %s23, 1
      %p240 = por %p238, %p239
      %p242 = scmp.ne.s32.totalorder %s225, %s241
      %p243 = scmp.eq.s32.totalorder %s23, 0
      %p244 = por %p242, %p243
      %p245 = scmp.le.s32.totalorder 1, %s17
      %p246 = scmp.lt.s32.totalorder %s17, 3
      %p247 = pnand %p245, %p246
      %p248 = pneg %p247
      // Predicated region
      $region9: #{stock_price_predictor.1} parent=5 // pred_check
        _
      $region10: #{stock_price_predictor.1} parent=5 // pred_check_branch
        %250 = sbr.rel (%p247) target = $region12
      $region11: #{stock_price_predictor.1} parent=5 // pred_region
        %s251 = ssub.s32 %s17, 1
        // Predicated region
        $region13: #{stock_price_predictor.1} parent=11 // pred_check
          %p252 = pneg %p64
        $region14: #{stock_price_predictor.1} parent=11 // pred_check_branch
          %254 = sbr.rel (%p252) target = $region16
        $region15: #{stock_price_predictor.1} parent=11 // pred_region
          _
        $region16: #{stock_price_predictor.1} parent=11 // pred_fallthru
          _
        // Predicated region
        $region17: #{stock_price_predictor.1} parent=11 // pred_check
          %p255 = pneg %p85
        $region18: #{stock_price_predictor.1} parent=11 // pred_check_branch
          %257 = sbr.rel (%p255) target = $region20
        $region19: #{stock_price_predictor.1} parent=11 // pred_region
          _
        $region20: #{stock_price_predictor.1} parent=11 // pred_fallthru
          _
        // Predicated region
        $region21: #{stock_price_predictor.1} parent=11 // pred_check
          %p258 = pneg %p106
        $region22: #{stock_price_predictor.1} parent=11 // pred_check_branch
          %260 = sbr.rel (%p258) target = $region24
        $region23: #{stock_price_predictor.1} parent=11 // pred_region
          _
        $region24: #{stock_price_predictor.1} parent=11 // pred_fallthru
          _
        // Predicated region
        $region25: #{stock_price_predictor.1} parent=11 // pred_check
          %p261 = pneg %p127
        $region26: #{stock_price_predictor.1} parent=11 // pred_check_branch
          %263 = sbr.rel (%p261) target = $region28
        $region27: #{stock_price_predictor.1} parent=11 // pred_region
          _
        $region28: #{stock_price_predictor.1} parent=11 // pred_fallthru
          _
        // Predicated region
        $region29: #{stock_price_predictor.1} parent=11 // pred_check
          %p264 = pneg %p148
        $region30: #{stock_price_predictor.1} parent=11 // pred_check_branch
          %266 = sbr.rel (%p264) target = $region32
        $region31: #{stock_price_predictor.1} parent=11 // pred_region
          _
        $region32: #{stock_price_predictor.1} parent=11 // pred_fallthru
          _
        // Predicated region
        $region33: #{stock_price_predictor.1} parent=11 // pred_check
          %p267 = pneg %p169
        $region34: #{stock_price_predictor.1} parent=11 // pred_check_branch
          %269 = sbr.rel (%p267) target = $region36
        $region35: #{stock_price_predictor.1} parent=11 // pred_region
          _
        $region36: #{stock_price_predictor.1} parent=11 // pred_fallthru
          _
        // Predicated region
        $region37: #{stock_price_predictor.1} parent=11 // pred_check
          %p270 = pneg %p190
        $region38: #{stock_price_predictor.1} parent=11 // pred_check_branch
          %272 = sbr.rel (%p270) target = $region40
        $region39: #{stock_price_predictor.1} parent=11 // pred_region
          _
        $region40: #{stock_price_predictor.1} parent=11 // pred_fallthru
          _
        // Predicated region
        $region41: #{stock_price_predictor.1} parent=11 // pred_check
          %p273 = pneg %p211
        $region42: #{stock_price_predictor.1} parent=11 // pred_check_branch
          %275 = sbr.rel (%p273) target = $region44
        $region43: #{stock_price_predictor.1} parent=11 // pred_region
          _
        $region44: #{stock_price_predictor.1} parent=11 // pred_fallthru
          _
      $region12: #{stock_price_predictor.1} parent=5 // pred_fallthru
        _
      %p276 = scmp.lt.s32.totalorder %s17, 2
      // Predicated region
      $region45: #{stock_price_predictor.1} parent=5 // pred_check
        %p277 = pneg %p276
      $region46: #{stock_price_predictor.1} parent=5 // pred_check_branch
        %279 = sbr.rel (%p277) target = $region48
      $region47: #{stock_price_predictor.1} parent=5 // pred_region
        // Predicated region
        $region49: #{stock_price_predictor.1} parent=47 // pred_check
          %p280 = pneg %p37
        $region50: #{stock_price_predictor.1} parent=47 // pred_check_branch
          %282 = sbr.rel (%p280) target = $region52
        $region51: #{stock_price_predictor.1} parent=47 // pred_region
          %s283 = sand.u32 %s27, 1
          %s284 = sand.u32 %s27, 1
          %s285 = smul.addr %s284, 8
          %s286 = scalar_lea.vmem [#allocation3], %s285
          %s287 = smul.addr %s17, 4
          %s288 = scalar_lea.vmem %s0, %s287
          // Predicated region
          $region53: #{stock_price_predictor.1} parent=51 // pred_check
            _
          $region54: #{stock_price_predictor.1} parent=51 // pred_check_branch
            %290 = sbr.rel (0) target = $region56
          $region55: #{stock_price_predictor.1} parent=51 // pred_region
            // Predicated region
            $region57: #{stock_price_predictor.1} parent=55 // pred_check
              _
            $region58: #{stock_price_predictor.1} parent=55 // pred_check_branch
              %292 = sbr.rel target = $region60
            $region59: #{stock_price_predictor.1} parent=55 // pred_region
              // Predicated region
              $region72: #{stock_price_predictor.1} parent=59 // pred_check
                _
              $region73: #{stock_price_predictor.1} parent=59 // pred_check_branch
                %310 = sbr.rel (0) target = $region75
              $region74: #{stock_price_predictor.1} parent=59 // pred_region
                loop: start=0, step=1, limit=1
                $region76: #{stock_price_predictor.1} parent=74 // loop_pre_header
                  _
                $region77: #{stock_price_predictor.1} parent=74 // loop_header
                  %s312 = sphi 0, %s316
                  %p313 = scmp.ge.s32.totalorder %s312, 1
                  %s317 = sphi %s288, %s288
                  %s318 = sphi %s286, %s286
                $region78: #{stock_price_predictor.1} parent=74 // loop_header_branch
                  %315 = sbr.rel (%p313) target = $region82
                $region79: #{stock_price_predictor.1} parent=74 // loop_body
                  _
                $region80: #{stock_price_predictor.1} parent=74 // loop_footer
                  %s316 = sadd.s32 1, %s312
                $region81: #{stock_price_predictor.1} parent=74 // loop_footer_branch
                  %311 = sbr.rel target = $region77
                $region82: #{stock_price_predictor.1} parent=74 // loop_exit
                  _
                %s320 = ssub.s32 16, 1
                loop: start=0, step=1, limit=1
                $region83: #{stock_price_predictor.1} parent=74 // loop_pre_header
                  _
                $region84: #{stock_price_predictor.1} parent=74 // loop_header
                  %s322 = sphi 0, %s326
                  %p323 = scmp.ge.s32.totalorder %s322, 1
                  %s327 = sphi %s288, %s288
                  %s328 = sphi %s286, %s286
                $region85: #{stock_price_predictor.1} parent=74 // loop_header_branch
                  %325 = sbr.rel (%p323) target = $region89
                $region86: #{stock_price_predictor.1} parent=74 // loop_body
                  %v329 = vld [vmem:[%s327] sm:%s320]
                  %330 = vst [vmem:[%s328] sm:%s320] %v329
                  %v331 = vld [vmem:[%s327 + $0x8] sm:%s320]
                  %332 = vst [vmem:[%s328 + $0x4] sm:%s320] %v331
                $region87: #{stock_price_predictor.1} parent=74 // loop_footer
                  %s326 = sadd.s32 1, %s322
                $region88: #{stock_price_predictor.1} parent=74 // loop_footer_branch
                  %321 = sbr.rel target = $region84
                $region89: #{stock_price_predictor.1} parent=74 // loop_exit
                  _
              $region75: #{stock_price_predictor.1} parent=59 // pred_fallthru
                _
            $region60: #{stock_price_predictor.1} parent=55 // pred_fallthru
              _
            // Predicated region
            $region61: #{stock_price_predictor.1} parent=55 // pred_check
              _
            $region62: #{stock_price_predictor.1} parent=55 // pred_check_branch
              %294 = sbr.rel (0) target = $region64
            $region63: #{stock_price_predictor.1} parent=55 // pred_region
              %s296 = ssub.s32 16, 1
              loop: start=0, step=1, limit=1
              $region65: #{stock_price_predictor.1} parent=63 // loop_pre_header
                _
              $region66: #{stock_price_predictor.1} parent=63 // loop_header
                %s298 = sphi 0, %s302
                %p299 = scmp.ge.s32.totalorder %s298, 1
                %s303 = sphi %s288, %s288
                %s304 = sphi %s286, %s286
              $region67: #{stock_price_predictor.1} parent=63 // loop_header_branch
                %301 = sbr.rel (%p299) target = $region71
              $region68: #{stock_price_predictor.1} parent=63 // loop_body
                %v305 = vld [vmem:[%s303] sm:%s296]
                %306 = vst [vmem:[%s304] sm:%s296] %v305
                %v307 = vld [vmem:[%s303 + $0x8] sm:%s296]
                %308 = vst [vmem:[%s304 + $0x4] sm:%s296] %v307
              $region69: #{stock_price_predictor.1} parent=63 // loop_footer
                %s302 = sadd.s32 1, %s298
              $region70: #{stock_price_predictor.1} parent=63 // loop_footer_branch
                %297 = sbr.rel target = $region66
              $region71: #{stock_price_predictor.1} parent=63 // loop_exit
                _
            $region64: #{stock_price_predictor.1} parent=55 // pred_fallthru
              _
          $region56: #{stock_price_predictor.1} parent=51 // pred_fallthru
            _
          %333 = vnop
        $region52: #{stock_price_predictor.1} parent=47 // pred_fallthru
          _
      $region48: #{stock_price_predictor.1} parent=5 // pred_fallthru
        _
      %p334 = scmp.le.s32.totalorder 1, %s17
      %p335 = scmp.lt.s32.totalorder %s17, 3
      %p336 = pnand %p334, %p335
      %p337 = pneg %p336
      // Predicated region
      $region90: #{stock_price_predictor.1} parent=5 // pred_check
        _
      $region91: #{stock_price_predictor.1} parent=5 // pred_check_branch
        %339 = sbr.rel (%p336) target = $region93
      $region92: #{stock_price_predictor.1} parent=5 // pred_region
        %s340 = ssub.s32 %s17, 1
        %s341 = sand.u32 %s30, 1
        %s342 = sand.u32 %s30, 1
        %s343 = smul.addr %s342, 8
        %s344 = scalar_lea.vmem [#allocation3], %s343
        // Predicated region
        $region94: #{stock_price_predictor.1} parent=92 // pred_check
          %p345 = pneg %p43
        $region95: #{stock_price_predictor.1} parent=92 // pred_check_branch
          %347 = sbr.rel (%p345) target = $region97
        $region96: #{stock_price_predictor.1} parent=92 // pred_region
          _
        $region97: #{stock_price_predictor.1} parent=92 // pred_fallthru
          _
        %s348 = sand.u32 %s30, 1
        %s349 = sand.u32 %s30, 1
        %s350 = smul.addr %s349, 8
        %s351 = scalar_lea.vmem [#allocation3], %s350
        %p352 = pneg %p43
        %p353 = pneg %p40
        %p354 = pneg %p64
        %p355 = pneg %p61
        %p356 = pneg %p85
        %p357 = pneg %p82
        %p358 = pneg %p106
        %p359 = pneg %p103
        %p360 = pneg %p127
        %p361 = pneg %p124
        %p362 = pneg %p148
        %p363 = pneg %p145
        %p364 = pneg %p169
        %p365 = pneg %p166
        %p366 = pneg %p190
        %p367 = pneg %p187
        %p368 = pneg %p211
        %p369 = pneg %p208
        %p370 = pneg %p237
        %p371 = pneg %p234
        %p372 = scmp.lt.s32.totalorder %s22, 1
        %s373 = scalar_select %p372, %s22, 1
        %s374 = scalar_lea.vmem %s9, %s373
        %p375 = scmp.lt.s32.totalorder %s22, 1
        %s376 = scalar_select %p375, %s22, 1
        %s377 = scalar_lea.vmem %s9, %s376
        %v379 = vld [vmem:[%s344] sm:$0xf]
        %v380 = vld [vmem:[%s344 + $0x4] sm:$0xf]
        %v381 = vld [vmem:[%s1] sm:$0xf]
        %v382 = vld [vmem:[%s1 + $0x4] sm:$0xf]
        %v383 = vld [vmem:[%s1 + $0x8] sm:$0xf]
        %v384 = vld [vmem:[%s1 + $0xc] sm:$0xf]
        %v385 = vld [vmem:[%s1 + $0x10] sm:$0xf]
        %v386 = vld [vmem:[%s1 + $0x14] sm:$0xf]
        %v387 = vld [vmem:[%s1 + $0x18] sm:$0xf]
        %v388 = vld [vmem:[%s1 + $0x1c] sm:$0xf]
        %v389 = vld [vmem:[%s1 + $0x20] sm:$0xf]
        %v390 = vld [vmem:[%s1 + $0x24] sm:$0xf]
        %v391 = vld [vmem:[%s1 + $0x28] sm:$0xf]
        %v392 = vld [vmem:[%s1 + $0x2c] sm:$0xf]
        %v393 = vld [vmem:[%s1 + $0x30] sm:$0xf]
        %v394 = vld [vmem:[%s1 + $0x34] sm:$0xf]
        %v395 = vld [vmem:[%s1 + $0x38] sm:$0xf]
        %v396 = vld [vmem:[%s1 + $0x3c] sm:$0xf]
        %v397 = vld [vmem:[%s2] sm:$0xff]
        %v398 = vld [vmem:[%s2 + $0x8] sm:$0xff]
        %v399 = vld [vmem:[%s2 + $0x10] sm:$0xff]
        %v400 = vld [vmem:[%s2 + $0x18] sm:$0xff]
        %v401 = vld [vmem:[%s2 + $0x20] sm:$0xff]
        %v402 = vld [vmem:[%s2 + $0x28] sm:$0xff]
        %v403 = vld [vmem:[%s2 + $0x30] sm:$0xff]
        %v404 = vld [vmem:[%s2 + $0x38] sm:$0xff]
        %v405 = vld [vmem:[%s2 + $0x40] sm:$0xff]
        %v406 = vld [vmem:[%s2 + $0x48] sm:$0xff]
        %v407 = vld [vmem:[%s2 + $0x50] sm:$0xff]
        %v408 = vld [vmem:[%s2 + $0x58] sm:$0xff]
        %v409 = vld [vmem:[%s2 + $0x60] sm:$0xff]
        %v410 = vld [vmem:[%s2 + $0x68] sm:$0xff]
        %v411 = vld [vmem:[%s2 + $0x70] sm:$0xff]
        %v412 = vld [vmem:[%s2 + $0x78] sm:$0xff]
        %414 = vset.pattern.permute.xlu0 0
        %415 = vperm.xlu0 %414, %v397
        %v416 = vpop.permute.xlu0 %415
        %419 = vset.pattern.permute.xlu0 0
        %420 = vperm.xlu0 %419, %v398
        %v421 = vpop.permute.xlu0 %420
        %424 = vset.pattern.permute.xlu0 0
        %425 = vperm.xlu0 %424, %v399
        %v426 = vpop.permute.xlu0 %425
        %429 = vset.pattern.permute.xlu0 0
        %430 = vperm.xlu0 %429, %v400
        %v431 = vpop.permute.xlu0 %430
        %434 = vset.pattern.permute.xlu0 0
        %435 = vperm.xlu0 %434, %v401
        %v436 = vpop.permute.xlu0 %435
        %439 = vset.pattern.permute.xlu0 0
        %440 = vperm.xlu0 %439, %v402
        %v441 = vpop.permute.xlu0 %440
        %444 = vset.pattern.permute.xlu0 0
        %445 = vperm.xlu0 %444, %v403
        %v446 = vpop.permute.xlu0 %445
        %449 = vset.pattern.permute.xlu0 0
        %450 = vperm.xlu0 %449, %v404
        %v451 = vpop.permute.xlu0 %450
        %454 = vset.pattern.permute.xlu0 0
        %455 = vperm.xlu0 %454, %v405
        %v456 = vpop.permute.xlu0 %455
        %459 = vset.pattern.permute.xlu0 0
        %460 = vperm.xlu0 %459, %v406
        %v461 = vpop.permute.xlu0 %460
        %464 = vset.pattern.permute.xlu0 0
        %465 = vperm.xlu0 %464, %v407
        %v466 = vpop.permute.xlu0 %465
        %469 = vset.pattern.permute.xlu0 0
        %470 = vperm.xlu0 %469, %v408
        %v471 = vpop.permute.xlu0 %470
        %474 = vset.pattern.permute.xlu0 0
        %475 = vperm.xlu0 %474, %v409
        %v476 = vpop.permute.xlu0 %475
        %479 = vset.pattern.permute.xlu0 0
        %480 = vperm.xlu0 %479, %v410
        %v481 = vpop.permute.xlu0 %480
        %484 = vset.pattern.permute.xlu0 0
        %485 = vperm.xlu0 %484, %v411
        %v486 = vpop.permute.xlu0 %485
        %489 = vset.pattern.permute.xlu0 0
        %490 = vperm.xlu0 %489, %v412
        %v491 = vpop.permute.xlu0 %490
        %v509 = vunpack.c.l.b16 %v381
        %v510 = vunpack.c.l.b16 %v382
        %v511 = vunpack.c.l.b16 %v383
        %v512 = vunpack.c.l.b16 %v384
        %v513 = vunpack.c.l.b16 %v385
        %v514 = vunpack.c.l.b16 %v386
        %v515 = vunpack.c.l.b16 %v387
        %v516 = vunpack.c.l.b16 %v388
        %v517 = vunpack.c.l.b16 %v389
        %v518 = vunpack.c.l.b16 %v390
        %v519 = vunpack.c.l.b16 %v391
        %v520 = vunpack.c.l.b16 %v392
        %v521 = vunpack.c.l.b16 %v393
        %v522 = vunpack.c.l.b16 %v394
        %v523 = vunpack.c.l.b16 %v395
        %v524 = vunpack.c.l.b16 %v396
        %v525 = vpack.c.b16 %v510, %v509
        %v526 = vpack.c.b16 %v512, %v511
        %v527 = vpack.c.b16 %v514, %v513
        %v528 = vpack.c.b16 %v516, %v515
        %v529 = vpack.c.b16 %v518, %v517
        %v530 = vpack.c.b16 %v520, %v519
        %v531 = vpack.c.b16 %v522, %v521
        %v532 = vpack.c.b16 %v524, %v523
        %v535 = vunpack.c.l.b16 %v379
        %v536 = vunpack.c.l.b16 %v380
        %v537 = vpack.c.b16 %v536, %v535
        %vm538 = vcmask 121856
        %v540 = vsel %vm538, %v525, 0
        %v543 = vsel %vm538, %v526, 0
        %v546 = vsel %vm538, %v527, 0
        %v549 = vsel %vm538, %v528, 0
        %v552 = vsel %vm538, %v529, 0
        %v555 = vsel %vm538, %v530, 0
        %v558 = vsel %vm538, %v531, 0
        %v561 = vsel %vm538, %v532, 0
        %vm563 = vcmask 1046528
        %vm564 = vcmask 1047552
        %v565 = vsel %vm563, 4294967295, 65535
        %v566 = vsel %vm564, %v565, 0
        %v568 = vand.u32 %v537, %v566
        %570 = vmatprep.subr.bf16.mxu0 0
        %571 = vmatpush1.bf16.msra.mxu0 0
        %572 = vmatprep.subr.bf16.mxu0 0
        %573 = vmatpush1.bf16.msra.mxu0 0
        %574 = vmatprep.subr.bf16.mxu0 0
        %575 = vmatpush1.bf16.msra.mxu0 0
        %576 = vmatprep.subr.bf16.mxu0 0
        %577 = vmatpush1.bf16.msra.mxu0 0
        %578 = vmatprep.subr.bf16.mxu0 0
        %579 = vmatpush1.bf16.msra.mxu0 0
        %580 = vmatprep.subr.bf16.mxu0 0
        %581 = vmatpush1.bf16.msra.mxu0 0
        %582 = vmatprep.subr.bf16.mxu0 0
        %583 = vmatpush1.bf16.msra.mxu0 0
        %584 = vmatprep.subr.bf16.mxu0 0
        %585 = vmatpush1.bf16.msra.mxu0 %v568
        %586 = vmatprep.subr.bf16.mxu0 0
        %587 = vmatpush2.bf16.msra.mxu0 0
        %588 = vmatprep.subr.bf16.mxu0 0
        %589 = vmatpush2.bf16.msra.mxu0 0
        %590 = vmatprep.subr.bf16.mxu0 0
        %591 = vmatpush2.bf16.msra.mxu0 0
        %592 = vmatprep.subr.bf16.mxu0 0
        %593 = vmatpush2.bf16.msra.mxu0 0
        %594 = vmatprep.subr.bf16.mxu0 0
        %595 = vmatpush2.bf16.msra.mxu0 0
        %596 = vmatprep.subr.bf16.mxu0 0
        %597 = vmatpush2.bf16.msra.mxu0 0
        %598 = vmatprep.subr.bf16.mxu0 0
        %599 = vmatpush2.bf16.msra.mxu0 0
        %600 = vmatprep.subr.bf16.mxu0 0
        %601 = vmatpush2.bf16.msra.mxu0 0
        %602 = vmatprep.mubr.bf16.mxu0 0
        %603 = vmatmul.mubr.bf16.gmra.mxu0 %v540
        %v604 = vpop.f32.mrf.mxu0
        %v605 = vadd.f32 %v416, %v604
        %v606 = vpop.f32.mrf.mxu0
        %v607 = vpop.f32.mrf.mxu0
        %v608 = vadd.f32 %v421, %v607
        %v609 = vpop.f32.mrf.mxu0
        %610 = vmatprep.mubr.bf16.mxu0 0
        %611 = vmatmul.mubr.bf16.gmra.mxu0 %v543
        %v612 = vpop.f32.mrf.mxu0
        %v613 = vadd.f32 %v426, %v612
        %v614 = vpop.f32.mrf.mxu0
        %v615 = vpop.f32.mrf.mxu0
        %v616 = vadd.f32 %v431, %v615
        %v617 = vpop.f32.mrf.mxu0
        %618 = vmatprep.mubr.bf16.mxu0 0
        %619 = vmatmul.mubr.bf16.gmra.mxu0 %v546
        %v620 = vpop.f32.mrf.mxu0
        %v621 = vadd.f32 %v436, %v620
        %v622 = vpop.f32.mrf.mxu0
        %v623 = vpop.f32.mrf.mxu0
        %v624 = vadd.f32 %v441, %v623
        %v625 = vpop.f32.mrf.mxu0
        %626 = vmatprep.mubr.bf16.mxu0 0
        %627 = vmatmul.mubr.bf16.gmra.mxu0 %v549
        %v628 = vpop.f32.mrf.mxu0
        %v629 = vadd.f32 %v446, %v628
        %v630 = vpop.f32.mrf.mxu0
        %v631 = vpop.f32.mrf.mxu0
        %v632 = vadd.f32 %v451, %v631
        %v633 = vpop.f32.mrf.mxu0
        %634 = vmatprep.mubr.bf16.mxu0 0
        %635 = vmatmul.mubr.bf16.gmra.mxu0 %v552
        %v636 = vpop.f32.mrf.mxu0
        %v637 = vadd.f32 %v456, %v636
        %v638 = vpop.f32.mrf.mxu0
        %v639 = vpop.f32.mrf.mxu0
        %v640 = vadd.f32 %v461, %v639
        %v641 = vpop.f32.mrf.mxu0
        %642 = vmatprep.mubr.bf16.mxu0 0
        %643 = vmatmul.mubr.bf16.gmra.mxu0 %v555
        %v644 = vpop.f32.mrf.mxu0
        %v645 = vadd.f32 %v466, %v644
        %v646 = vpop.f32.mrf.mxu0
        %v647 = vpop.f32.mrf.mxu0
        %v648 = vadd.f32 %v471, %v647
        %v649 = vpop.f32.mrf.mxu0
        %650 = vmatprep.mubr.bf16.mxu0 0
        %651 = vmatmul.mubr.bf16.gmra.mxu0 %v558
        %v652 = vpop.f32.mrf.mxu0
        %v653 = vadd.f32 %v476, %v652
        %v654 = vpop.f32.mrf.mxu0
        %v655 = vpop.f32.mrf.mxu0
        %v656 = vadd.f32 %v481, %v655
        %v657 = vpop.f32.mrf.mxu0
        %658 = vmatprep.mubr.bf16.mxu0 0
        %659 = vmatmul.mubr.bf16.gmra.mxu0 %v561
        %v660 = vpop.f32.mrf.mxu0
        %v661 = vadd.f32 %v486, %v660
        %v662 = vpop.f32.mrf.mxu0
        %v663 = vpop.f32.mrf.mxu0
        %v664 = vadd.f32 %v491, %v663
        %v665 = vpop.f32.mrf.mxu0
        %666 = vdwg.mxu0
        %v667 = vmax.f32 %v605, 0.0
        %v668 = vmax.f32 %v608, 0.0
        %v669 = vmax.f32 %v613, 0.0
        %v670 = vmax.f32 %v616, 0.0
        %v671 = vmax.f32 %v621, 0.0
        %v672 = vmax.f32 %v624, 0.0
        %v673 = vmax.f32 %v629, 0.0
        %v674 = vmax.f32 %v632, 0.0
        %v675 = vmax.f32 %v637, 0.0
        %v676 = vmax.f32 %v640, 0.0
        %v677 = vmax.f32 %v645, 0.0
        %v678 = vmax.f32 %v648, 0.0
        %v679 = vmax.f32 %v653, 0.0
        %v680 = vmax.f32 %v656, 0.0
        %v681 = vmax.f32 %v661, 0.0
        %v682 = vmax.f32 %v664, 0.0
        %v683 = vpack.c.bf16 %v668, %v667
        %v684 = vpack.c.bf16 %v670, %v669
        %v685 = vpack.c.bf16 %v672, %v671
        %v686 = vpack.c.bf16 %v674, %v673
        %v687 = vpack.c.bf16 %v676, %v675
        %v688 = vpack.c.bf16 %v678, %v677
        %v689 = vpack.c.bf16 %v680, %v679
        %v690 = vpack.c.bf16 %v682, %v681
        %v691 = vld [vmem:[%s3] sm:$0xf]
        %v692 = vld [vmem:[%s3 + $0x4] sm:$0xf]
        %v693 = vld [vmem:[%s3 + $0x8] sm:$0xf]
        %v694 = vld [vmem:[%s3 + $0xc] sm:$0xf]
        %v695 = vld [vmem:[%s3 + $0x10] sm:$0xf]
        %v696 = vld [vmem:[%s3 + $0x14] sm:$0xf]
        %v697 = vld [vmem:[%s3 + $0x18] sm:$0xf]
        %v698 = vld [vmem:[%s3 + $0x1c] sm:$0xf]
        %v699 = vld [vmem:[%s4] sm:$0xff]
        %v700 = vld [vmem:[%s4 + $0x8] sm:$0xff]
        %v701 = vld [vmem:[%s4 + $0x10] sm:$0xff]
        %v702 = vld [vmem:[%s4 + $0x18] sm:$0xff]
        %v703 = vld [vmem:[%s4 + $0x20] sm:$0xff]
        %v704 = vld [vmem:[%s4 + $0x28] sm:$0xff]
        %v705 = vld [vmem:[%s4 + $0x30] sm:$0xff]
        %v706 = vld [vmem:[%s4 + $0x38] sm:$0xff]
        %708 = vset.pattern.permute.xlu0 0
        %709 = vperm.xlu0 %708, %v699
        %v710 = vpop.permute.xlu0 %709
        %713 = vset.pattern.permute.xlu0 0
        %714 = vperm.xlu0 %713, %v700
        %v715 = vpop.permute.xlu0 %714
        %718 = vset.pattern.permute.xlu0 0
        %719 = vperm.xlu0 %718, %v701
        %v720 = vpop.permute.xlu0 %719
        %723 = vset.pattern.permute.xlu0 0
        %724 = vperm.xlu0 %723, %v702
        %v725 = vpop.permute.xlu0 %724
        %728 = vset.pattern.permute.xlu0 0
        %729 = vperm.xlu0 %728, %v703
        %v730 = vpop.permute.xlu0 %729
        %733 = vset.pattern.permute.xlu0 0
        %734 = vperm.xlu0 %733, %v704
        %v735 = vpop.permute.xlu0 %734
        %738 = vset.pattern.permute.xlu0 0
        %739 = vperm.xlu0 %738, %v705
        %v740 = vpop.permute.xlu0 %739
        %743 = vset.pattern.permute.xlu0 0
        %744 = vperm.xlu0 %743, %v706
        %v745 = vpop.permute.xlu0 %744
        %v755 = vunpack.c.l.b16 %v691
        %v756 = vunpack.c.l.b16 %v692
        %v757 = vunpack.c.l.b16 %v693
        %v758 = vunpack.c.l.b16 %v694
        %v759 = vunpack.c.l.b16 %v695
        %v760 = vunpack.c.l.b16 %v696
        %v761 = vunpack.c.l.b16 %v697
        %v762 = vunpack.c.l.b16 %v698
        %v763 = vpack.c.b16 %v756, %v755
        %v764 = vpack.c.b16 %v758, %v757
        %v765 = vpack.c.b16 %v760, %v759
        %v766 = vpack.c.b16 %v762, %v761
        %771 = vmatprep.subr.bf16.mxu0 0
        %772 = vmatpush1.bf16.msra.mxu0 %v690
        %773 = vmatprep.subr.bf16.mxu0 0
        %774 = vmatpush1.bf16.msra.mxu0 %v689
        %775 = vmatprep.subr.bf16.mxu0 0
        %776 = vmatpush1.bf16.msra.mxu0 %v688
        %777 = vmatprep.subr.bf16.mxu0 0
        %778 = vmatpush1.bf16.msra.mxu0 %v687
        %779 = vmatprep.subr.bf16.mxu0 0
        %780 = vmatpush1.bf16.msra.mxu0 %v686
        %781 = vmatprep.subr.bf16.mxu0 0
        %782 = vmatpush1.bf16.msra.mxu0 %v685
        %783 = vmatprep.subr.bf16.mxu0 0
        %784 = vmatpush1.bf16.msra.mxu0 %v684
        %785 = vmatprep.subr.bf16.mxu0 0
        %786 = vmatpush1.bf16.msra.mxu0 %v683
        %787 = vmatprep.subr.bf16.mxu0 0
        %788 = vmatpush2.bf16.msra.mxu0 0
        %789 = vmatprep.subr.bf16.mxu0 0
        %790 = vmatpush2.bf16.msra.mxu0 0
        %791 = vmatprep.subr.bf16.mxu0 0
        %792 = vmatpush2.bf16.msra.mxu0 0
        %793 = vmatprep.subr.bf16.mxu0 0
        %794 = vmatpush2.bf16.msra.mxu0 0
        %795 = vmatprep.subr.bf16.mxu0 0
        %796 = vmatpush2.bf16.msra.mxu0 0
        %797 = vmatprep.subr.bf16.mxu0 0
        %798 = vmatpush2.bf16.msra.mxu0 0
        %799 = vmatprep.subr.bf16.mxu0 0
        %800 = vmatpush2.bf16.msra.mxu0 0
        %801 = vmatprep.subr.bf16.mxu0 0
        %802 = vmatpush2.bf16.msra.mxu0 0
        %803 = vmatprep.mubr.bf16.mxu0 0
        %804 = vmatmul.mubr.bf16.gmra.mxu0 %v763
        %v805 = vpop.f32.mrf.mxu0
        %v806 = vadd.f32 %v710, %v805
        %v807 = vpop.f32.mrf.mxu0
        %v808 = vpop.f32.mrf.mxu0
        %v809 = vadd.f32 %v715, %v808
        %v810 = vpop.f32.mrf.mxu0
        %811 = vmatprep.mubr.bf16.mxu0 0
        %812 = vmatmul.mubr.bf16.gmra.mxu0 %v764
        %v813 = vpop.f32.mrf.mxu0
        %v814 = vadd.f32 %v720, %v813
        %v815 = vpop.f32.mrf.mxu0
        %v816 = vpop.f32.mrf.mxu0
        %v817 = vadd.f32 %v725, %v816
        %v818 = vpop.f32.mrf.mxu0
        %819 = vmatprep.mubr.bf16.mxu0 0
        %820 = vmatmul.mubr.bf16.gmra.mxu0 %v765
        %v821 = vpop.f32.mrf.mxu0
        %v822 = vadd.f32 %v730, %v821
        %v823 = vpop.f32.mrf.mxu0
        %v824 = vpop.f32.mrf.mxu0
        %v825 = vadd.f32 %v735, %v824
        %v826 = vpop.f32.mrf.mxu0
        %827 = vmatprep.mubr.bf16.mxu0 0
        %828 = vmatmul.mubr.bf16.gmra.mxu0 %v766
        %v829 = vpop.f32.mrf.mxu0
        %v830 = vadd.f32 %v740, %v829
        %v831 = vpop.f32.mrf.mxu0
        %v832 = vpop.f32.mrf.mxu0
        %v833 = vadd.f32 %v745, %v832
        %v834 = vpop.f32.mrf.mxu0
        %835 = vdwg.mxu0
        %v836 = vmax.f32 %v806, 0.0
        %v837 = vmax.f32 %v809, 0.0
        %v838 = vmax.f32 %v814, 0.0
        %v839 = vmax.f32 %v817, 0.0
        %v840 = vmax.f32 %v822, 0.0
        %v841 = vmax.f32 %v825, 0.0
        %v842 = vmax.f32 %v830, 0.0
        %v843 = vmax.f32 %v833, 0.0
        %v844 = vpack.c.bf16 %v837, %v836
        %v845 = vpack.c.bf16 %v839, %v838
        %v846 = vpack.c.bf16 %v841, %v840
        %v847 = vpack.c.bf16 %v843, %v842
        %v848 = vld [vmem:[%s5] sm:$0xf]
        %v849 = vld [vmem:[%s5 + $0x4] sm:$0xf]
        %v850 = vld [vmem:[%s5 + $0x8] sm:$0xf]
        %v851 = vld [vmem:[%s5 + $0xc] sm:$0xf]
        %v852 = vld [vmem:[%s6] sm:$0xff]
        %v853 = vld [vmem:[%s6 + $0x8] sm:$0xff]
        %v854 = vld [vmem:[%s6 + $0x10] sm:$0xff]
        %v855 = vld [vmem:[%s6 + $0x18] sm:$0xff]
        %857 = vset.pattern.permute.xlu0 0
        %858 = vperm.xlu0 %857, %v852
        %v859 = vpop.permute.xlu0 %858
        %862 = vset.pattern.permute.xlu0 0
        %863 = vperm.xlu0 %862, %v853
        %v864 = vpop.permute.xlu0 %863
        %867 = vset.pattern.permute.xlu0 0
        %868 = vperm.xlu0 %867, %v854
        %v869 = vpop.permute.xlu0 %868
        %872 = vset.pattern.permute.xlu0 0
        %873 = vperm.xlu0 %872, %v855
        %v874 = vpop.permute.xlu0 %873
        %v880 = vunpack.c.l.b16 %v848
        %v881 = vunpack.c.l.b16 %v849
        %v882 = vunpack.c.l.b16 %v850
        %v883 = vunpack.c.l.b16 %v851
        %v884 = vpack.c.b16 %v881, %v880
        %v885 = vpack.c.b16 %v883, %v882
        %vm886 = vcmask 523264
        %v888 = vsel %vm886, %v884, 0
        %v891 = vsel %vm886, %v885, 0
        %893 = vmatprep.subr.bf16.mxu0 0
        %894 = vmatpush1.bf16.msra.mxu0 0
        %895 = vmatprep.subr.bf16.mxu0 0
        %896 = vmatpush1.bf16.msra.mxu0 0
        %897 = vmatprep.subr.bf16.mxu0 0
        %898 = vmatpush1.bf16.msra.mxu0 0
        %899 = vmatprep.subr.bf16.mxu0 0
        %900 = vmatpush1.bf16.msra.mxu0 0
        %901 = vmatprep.subr.bf16.mxu0 0
        %902 = vmatpush1.bf16.msra.mxu0 %v847
        %903 = vmatprep.subr.bf16.mxu0 0
        %904 = vmatpush1.bf16.msra.mxu0 %v846
        %905 = vmatprep.subr.bf16.mxu0 0
        %906 = vmatpush1.bf16.msra.mxu0 %v845
        %907 = vmatprep.subr.bf16.mxu0 0
        %908 = vmatpush1.bf16.msra.mxu0 %v844
        %909 = vmatprep.subr.bf16.mxu0 0
        %910 = vmatpush2.bf16.msra.mxu0 0
        %911 = vmatprep.subr.bf16.mxu0 0
        %912 = vmatpush2.bf16.msra.mxu0 0
        %913 = vmatprep.subr.bf16.mxu0 0
        %914 = vmatpush2.bf16.msra.mxu0 0
        %915 = vmatprep.subr.bf16.mxu0 0
        %916 = vmatpush2.bf16.msra.mxu0 0
        %917 = vmatprep.subr.bf16.mxu0 0
        %918 = vmatpush2.bf16.msra.mxu0 0
        %919 = vmatprep.subr.bf16.mxu0 0
        %920 = vmatpush2.bf16.msra.mxu0 0
        %921 = vmatprep.subr.bf16.mxu0 0
        %922 = vmatpush2.bf16.msra.mxu0 0
        %923 = vmatprep.subr.bf16.mxu0 0
        %924 = vmatpush2.bf16.msra.mxu0 0
        %925 = vmatprep.mubr.bf16.mxu0 0
        %926 = vmatmul.mubr.bf16.gmra.mxu0 %v888
        %v927 = vpop.f32.mrf.mxu0
        %v928 = vadd.f32 %v859, %v927
        %v929 = vpop.f32.mrf.mxu0
        %v930 = vpop.f32.mrf.mxu0
        %v931 = vadd.f32 %v864, %v930
        %v932 = vpop.f32.mrf.mxu0
        %933 = vmatprep.mubr.bf16.mxu0 0
        %934 = vmatmul.mubr.bf16.gmra.mxu0 %v891
        %v935 = vpop.f32.mrf.mxu0
        %v936 = vadd.f32 %v869, %v935
        %v937 = vpop.f32.mrf.mxu0
        %v938 = vpop.f32.mrf.mxu0
        %v939 = vadd.f32 %v874, %v938
        %v940 = vpop.f32.mrf.mxu0
        %941 = vdwg.mxu0
        %v942 = vmax.f32 %v928, 0.0
        %v943 = vmax.f32 %v931, 0.0
        %v944 = vmax.f32 %v936, 0.0
        %v945 = vmax.f32 %v939, 0.0
        %v946 = vpack.c.bf16 %v943, %v942
        %v947 = vpack.c.bf16 %v945, %v944
        %v948 = vld [vmem:[%s7] sm:$0x1]
        %v949 = vld [vmem:[#allocation2] sm:$0x1]
        %951 = vset.pattern.permute.xlu0 0
        %952 = vperm.xlu0 %951, %v949
        %v953 = vpop.permute.xlu0 %952
        %v955 = vlaneseq
        %v956 = vshrl.u32 %v955, 7
        %v957 = vsub.s32 0, %v956
        %v958 = vrot.slane %v953, %v957
        %vm959 = vcmask 261120
        %v961 = vsel %vm959, %v948, 0
        %963 = vmatprep.subr.bf16.mxu0 0
        %964 = vmatpush1.bf16.msra.mxu0 0
        %965 = vmatprep.subr.bf16.mxu0 0
        %966 = vmatpush1.bf16.msra.mxu0 0
        %967 = vmatprep.subr.bf16.mxu0 0
        %968 = vmatpush1.bf16.msra.mxu0 0
        %969 = vmatprep.subr.bf16.mxu0 0
        %970 = vmatpush1.bf16.msra.mxu0 0
        %971 = vmatprep.subr.bf16.mxu0 0
        %972 = vmatpush1.bf16.msra.mxu0 0
        %973 = vmatprep.subr.bf16.mxu0 0
        %974 = vmatpush1.bf16.msra.mxu0 0
        %975 = vmatprep.subr.bf16.mxu0 0
        %976 = vmatpush1.bf16.msra.mxu0 %v947
        %977 = vmatprep.subr.bf16.mxu0 0
        %978 = vmatpush1.bf16.msra.mxu0 %v946
        %979 = vmatprep.subr.bf16.mxu0 0
        %980 = vmatpush2.bf16.msra.mxu0 0
        %981 = vmatprep.subr.bf16.mxu0 0
        %982 = vmatpush2.bf16.msra.mxu0 0
        %983 = vmatprep.subr.bf16.mxu0 0
        %984 = vmatpush2.bf16.msra.mxu0 0
        %985 = vmatprep.subr.bf16.mxu0 0
        %986 = vmatpush2.bf16.msra.mxu0 0
        %987 = vmatprep.subr.bf16.mxu0 0
        %988 = vmatpush2.bf16.msra.mxu0 0
        %989 = vmatprep.subr.bf16.mxu0 0
        %990 = vmatpush2.bf16.msra.mxu0 0
        %991 = vmatprep.subr.bf16.mxu0 0
        %992 = vmatpush2.bf16.msra.mxu0 0
        %993 = vmatprep.subr.bf16.mxu0 0
        %994 = vmatpush2.bf16.msra.mxu0 0
        %995 = vmatprep.mubr.bf16.mxu0 0
        %996 = vmatmul.mubr.bf16.gmra.mxu0 %v961
        %v997 = vpop.f32.mrf.mxu0
        %v998 = vadd.f32 %v958, %v997
        %v999 = vpop.f32.mrf.mxu0
        %v1000 = vpop.f32.mrf.mxu0
        %v1001 = vpop.f32.mrf.mxu0
        %1002 = vdwg.mxu0
        %1003 = vst [vmem:[%s377] sm:$0x1] %v998
        %p1004 = scmp.lt.s32.totalorder %s22, 1
        %s1005 = scalar_select %p1004, %s22, 1
        %s1006 = scalar_lea.vmem %s9, %s1005
        // Predicated region
        $region98: #{stock_price_predictor.1} parent=92 // pred_check
          %p1007 = pneg %p234
        $region99: #{stock_price_predictor.1} parent=92 // pred_check_branch
          %1009 = sbr.rel (%p1007) target = $region101
        $region100: #{stock_price_predictor.1} parent=92 // pred_region
          _
        $region101: #{stock_price_predictor.1} parent=92 // pred_fallthru
          _
      $region93: #{stock_price_predictor.1} parent=5 // pred_fallthru
        _
      %p1010 = scmp.le.s32.totalorder 2, %s17
      // Predicated region
      $region102: #{stock_price_predictor.1} parent=5 // pred_check
        %p1011 = pneg %p1010
      $region103: #{stock_price_predictor.1} parent=5 // pred_check_branch
        %1013 = sbr.rel (%p1011) target = $region105
      $region104: #{stock_price_predictor.1} parent=5 // pred_region
        %s1014 = ssub.s32 %s17, 2
        // Predicated region
        $region106: #{stock_price_predictor.1} parent=104 // pred_check
          %p1015 = pneg %p240
        $region107: #{stock_price_predictor.1} parent=104 // pred_check_branch
          %1017 = sbr.rel (%p1015) target = $region109
        $region108: #{stock_price_predictor.1} parent=104 // pred_region
          %p1018 = scmp.lt.s32.totalorder %s23, 1
          %s1019 = scalar_select %p1018, %s23, 1
          %s1020 = scalar_lea.vmem %s9, %s1019
        $region109: #{stock_price_predictor.1} parent=104 // pred_fallthru
          _
      $region105: #{stock_price_predictor.1} parent=5 // pred_fallthru
        _
    $region6: #{stock_price_predictor.1} parent=1 // loop_footer
      %s21 = sadd.s32 1, %s17
    $region7: #{stock_price_predictor.1} parent=1 // loop_footer_branch
      %16 = sbr.rel target = $region3
    $region8: #{stock_price_predictor.1} parent=1 // loop_exit
      _

</llo_original>
